<compile_context>
chip_gen: v6e
topology: v6e:2x2x1
jax: 0.10.0
libtpu: 0.0.40
codegen_flags: <defaults>
</compile_context>

<pallas_src>
import functools

import jax
import jax.numpy as jnp
from jax.experimental import pallas as pl
from jax.experimental.pallas import tpu as pltpu


# ------------------------------ fused kernel ------------------------------- #

def _stem_kernel(lhs_ref, halo_ref, edge_ref,
                 w1_ref, b1_ref, wext_ref, bext_ref,
                 wdw_ref, bdw_ref, wf_ref, bf_ref,
                 out_ref, *, Mq, Wo2):
    """Whole-stem forward for one (batch, row-tile) grid step.

    Activations at the conv1 resolution are held as 4 stacked parity planes
    (pi, pj); each plane has Mq = (TR+1)*Wo2 rows: one halo coarse row followed
    by the TR rows of this tile, flattened row-major (no padded column).
    """
    f32 = jnp.float32
    M = Mq - Wo2                       # TR * Wo2 output pixels of this tile

    # conv1 3x3/s2 (+ folded BN scale) + bias + ReLU: one K = 9*Cin matmul.
    y = jnp.dot(lhs_ref[0, 0], w1_ref[...], preferred_element_type=f32)
    y = jnp.maximum(y + b1_ref[...], 0.0)                    # (4*Mq, C1)

    # Channel split + branch2 first 1x1 (+BN+ReLU) fused into one matmul with
    # an identity block passing branch1 channels through (already >= 0, so the
    # ReLU is a no-op on them).  The halo mask zeroes tile-0 out-of-image rows.
    yd = jnp.dot(y.astype(jnp.bfloat16), wext_ref[...], preferred_element_type=f32)
    yd = jnp.maximum(yd + bext_ref[...], 0.0) * halo_ref[0]  # (4*Mq, bc+mid)

    # Merged depthwise 3x3/s2 (+ folded BN scale, bias, no ReLU) for both
    # branches at once.  Every stride-2 tap is a static contiguous row slice of
    # the stacked parity planes; left-edge (kw == 0) taps are masked by `edge`.
    PAR = ((1, -1), (0, 0), (1, 0))    # dw kernel index -> (parity, coarse offset)
    wdw = wdw_ref[...]
    edge = edge_ref[...]
    Cd = wdw.shape[-1]
    acc = jnp.broadcast_to(bdw_ref[...], (M, Cd)).astype(f32)
    for kh in range(3):
        pi, da = PAR[kh]
        for kw in range(3):
            pj, db = PAR[kw]
            start = (2 * pi + pj) * Mq + Wo2 + da * Wo2 + db  # always in [0, 4*Mq-M]
            tap = yd[start:start + M, :]
            if db == -1:
                tap = tap * edge
            acc = acc + tap * wdw[kh * 3 + kw:kh * 3 + kw + 1, :]

    # Fused branch 1x1s (+BN+ReLU) with channel-shuffled output columns:
    # one matmul, one store, already in the module's final channel order.
    out = jnp.dot(acc.astype(jnp.bfloat16), wf_ref[...], preferred_element_type=f32)
    out_ref[0, 0] = jnp.maximum(out + bf_ref[...], 0.0).astype(out_ref.dtype)


# ------------------------------- glue helpers ------------------------------ #

def channel_shuffle_nhwc(x, groups):
    N, H, W, C = x.shape
    x = x.reshape(N, H, W, groups, C // groups)
    x = jnp.transpose(x, (0, 1, 2, 4, 3))
    return x.reshape(N, H, W, C)


def _pick_tile_rows(Ho2, Wo2, target_rows=1024):
    """Largest row-tile TR dividing Ho2 with TR*Wo2 <= target and >= 2 tiles."""
    best = 1
    for tr in range(1, Ho2 + 1):
        if Ho2 % tr == 0 and tr * Wo2 <= target_rows and (Ho2 // tr >= 2 or Ho2 == 1):
            best = tr
    return best


# -------------------------------- Stem model ------------------------------- #

def stem_forward(x_nchw, p):
    N, Cin, H, W = x_nchw.shape
    # TODO(synk): inputs with H or W not divisible by 4 are not handled.
    assert H % 4 == 0 and W % 4 == 0, "stem kernel expects H, W divisible by 4"
    Ho2, Wo2 = H // 4, W // 4
    Ho, Wo = H // 2, W // 2
    TR = _pick_tile_rows(Ho2, Wo2)
    n_tiles = Ho2 // TR
    Mq = (TR + 1) * Wo2                # rows per parity plane (incl. halo row)
    M = TR * Wo2                       # output pixels per tile

    C1 = p['conv1_w'].shape[-1]
    bc = C1 // 2
    mid = p['b2_pw1_w'].shape[-1]
    inc = p['b1_pw_w'].shape[-1]
    b2o = p['b2_pw2_w'].shape[-1]
    Cout = inc + b2o
    Cd = bc + mid
    K = 9 * Cin
    assert Cout % 2 == 0

    f32 = jnp.float32
    bf16 = jnp.bfloat16

    # ---- conv1 im2col: lane-fused K = 9*Cin, parity + tile row layout, bf16 --
    x = jnp.transpose(x_nchw, (0, 2, 3, 1))                  # NHWC
    xp = jnp.pad(x, ((0, 0), (5, 6), (1, 4), (0, 0)))        # generous zero pad
    taps = []
    for kh in range(3):
        for kw in range(3):
            taps.append(xp[:, kh:kh + 4 * (Ho2 + 1):2, kw:kw + 2 * Wo:2, :])
    col = jnp.stack(taps, axis=3)                            # (N, Ho+2, Wo, 9, Cin)
    col = col.reshape(N, Ho2 + 1, 2, Wo2, 2, K)              # (n, a2, pi, b, pj, K)
    col = jnp.transpose(col, (0, 2, 4, 1, 3, 5))             # (n, pi, pj, a2, b, K)
    idx = (jnp.arange(n_tiles)[:, None] * TR
           + jnp.arange(TR + 1)[None, :]).reshape(-1)        # halo row duplicated
    col = jnp.take(col, idx, axis=3)
    col = col.reshape(N, 2, 2, n_tiles, TR + 1, Wo2, K)
    col = jnp.transpose(col, (0, 3, 1, 2, 4, 5, 6))          # (n, t, pi, pj, r, b, K)
    lhs = col.reshape(N, n_tiles, 4 * Mq, K).astype(bf16)

    # ---- masks ---------------------------------------------------------------
    rows = jnp.arange(4 * Mq)
    halo0 = ((rows % Mq) >= Wo2).astype(f32).reshape(4 * Mq, 1)   # zero halo rows
    halo = jnp.ones((n_tiles, 4 * Mq, 1), f32).at[0].set(halo0)   # only tile 0
    edge = (jnp.arange(M) % Wo2 != 0).astype(f32).reshape(M, 1)   # left image edge

    # ---- fold BN scales into weights; biases stay as (1, C) adds -------------
    w1 = (p['conv1_w'].reshape(K, C1) * p['conv1_s'][None, :]).astype(bf16)
    b1 = p['conv1_b'].reshape(1, C1).astype(f32)

    wext = jnp.zeros((C1, Cd), f32)
    wext = wext.at[:bc, :bc].set(jnp.eye(bc, dtype=f32))
    wext = wext.at[bc:, bc:].set(p['b2_pw1_w'] * p['b2_pw1_s'][None, :])
    wext = wext.astype(bf16)
    bext = jnp.concatenate([jnp.zeros((bc,), f32), p['b2_pw1_b']]).reshape(1, Cd)

    wdw = jnp.concatenate(
        [p['b1_dw_w'].reshape(9, bc) * p['b1_dw_s'][None, :],
         p['b2_dw_w'].reshape(9, mid) * p['b2_dw_s'][None, :]], axis=1).astype(f32)
    bdw = jnp.concatenate([p['b1_dw_b'], p['b2_dw_b']]).reshape(1, Cd).astype(f32)

    wf = jnp.zeros((Cd, Cout), f32)
    wf = wf.at[:bc, :inc].set(p['b1_pw_w'] * p['b1_pw_s'][None, :])
    wf = wf.at[bc:, inc:].set(p['b2_pw2_w'] * p['b2_pw2_s'][None, :])
    bfv = jnp.concatenate([p['b1_pw_b'], p['b2_pw2_b']])
    perm = jnp.array([(c % 2) * (Cout // 2) + (c // 2) for c in range(Cout)],
                     jnp.int32)                                 # channel shuffle
    wf = wf[:, perm].astype(bf16)
    bfv = bfv[perm].reshape(1, Cout).astype(f32)

    # ---- specs ----------------------------------------------------------------
    def const_spec(a):
        return pl.BlockSpec(a.shape, lambda n, t: (0,) * a.ndim)

    in_specs = [
        pl.BlockSpec((1, 1, 4 * Mq, K), lambda n, t: (n, t, 0, 0)),
        pl.BlockSpec((1, 4 * Mq, 1), lambda n, t: (t, 0, 0)),
        const_spec(edge), const_spec(w1), const_spec(b1),
        const_spec(wext), const_spec(bext), const_spec(wdw), const_spec(bdw),
        const_spec(wf), const_spec(bfv),
    ]
    out_spec = pl.BlockSpec((1, 1, M, Cout), lambda n, t: (n, t, 0, 0))

    # ---- VMEM budget derived from actual block sizes, and advisory cost ------
    blk_in = 4 * Mq * K * 2
    blk_out = M * Cout * 4
    act = 4 * Mq * (C1 + Cd) * 4 + M * (Cd + Cout) * 4
    w_bytes = sum(int(a.size) * int(a.dtype.itemsize)
                  for a in (w1, b1, wext, bext, wdw, bdw, wf, bfv, edge))
    w_bytes += 4 * Mq * 4
    vmem_limit = int(min(64 << 20,
                         max(16 << 20,
                             8 * (blk_in + blk_out) + 6 * act + w_bytes + (2 << 20))))

    flops = N * n_tiles * (2 * 4 * Mq * K * C1 + 2 * 4 * Mq * C1 * Cd
                           + 18 * M * Cd + 2 * M * Cd * Cout)
    bytes_accessed = int(lhs.size) * 2 + N * Ho2 * Wo2 * Cout * 4 \
        + w_bytes + n_tiles * 4 * Mq * 4

    out = pl.pallas_call(
        functools.partial(_stem_kernel, Mq=Mq, Wo2=Wo2),
        grid=(N, n_tiles),
        in_specs=in_specs,
        out_specs=out_spec,
        out_shape=jax.ShapeDtypeStruct((N, n_tiles, M, Cout), jnp.float32),
        compiler_params=pltpu.CompilerParams(
            dimension_semantics=("parallel", "parallel"),
            vmem_limit_bytes=vmem_limit),
        cost_estimate=pl.CostEstimate(flops=int(flops), transcendentals=0,
                                      bytes_accessed=int(bytes_accessed)),
    )(lhs, halo, edge, w1, b1, wext, bext, wdw, bdw, wf, bfv)

    # Tiles are row-major slabs of the final feature map; just reshape + NCHW.
    out = out.reshape(N, Ho2, Wo2, Cout)
    return jnp.transpose(out, (0, 3, 1, 2))


def _fold_bn(gamma, beta, mean, var, eps=1e-5):
    scale = gamma * jax.lax.rsqrt(var + eps)
    return scale, beta - mean * scale


def init_params(key, in_ch, stem_ch, out_ch, expand_ratio=1):
    ks = iter(jax.random.split(key, 32))

    def w(shape, fan_in):
        return jax.random.normal(next(ks), shape, jnp.float32) * (2.0 / fan_in) ** 0.5 * 0.5

    def bn(c):
        gamma = 1.0 + 0.1 * jax.random.normal(next(ks), (c,), jnp.float32)
        beta = 0.1 * jax.random.normal(next(ks), (c,), jnp.float32)
        mean = 0.1 * jax.random.normal(next(ks), (c,), jnp.float32)
        var = 1.0 + 0.1 * jnp.abs(jax.random.normal(next(ks), (c,), jnp.float32))
        return _fold_bn(gamma, beta, mean, var)

    bc = stem_ch // 2
    mid = int(round(stem_ch * expand_ratio))
    inc = out_ch - bc if stem_ch == out_ch else out_ch - stem_ch
    b2_out = bc if stem_ch == out_ch else stem_ch

    p = {}
    p['conv1_w'] = w((3, 3, in_ch, stem_ch), 9 * in_ch)      # HWIO
    p['conv1_s'], p['conv1_b'] = bn(stem_ch)
    p['b1_dw_w'] = w((3, 3, bc), 9)                           # depthwise HWC
    p['b1_dw_s'], p['b1_dw_b'] = bn(bc)
    p['b1_pw_w'] = w((bc, inc), bc)                           # 1x1 as (Cin,Cout)
    p['b1_pw_s'], p['b1_pw_b'] = bn(inc)
    p['b2_pw1_w'] = w((bc, mid), bc)
    p['b2_pw1_s'], p['b2_pw1_b'] = bn(mid)
    p['b2_dw_w'] = w((3, 3, mid), 9)
    p['b2_dw_s'], p['b2_dw_b'] = bn(mid)
    p['b2_pw2_w'] = w((mid, b2_out), mid)
    p['b2_pw2_s'], p['b2_pw2_b'] = bn(b2_out)
    return p


# ------------------------- pure-JAX reference check ------------------------ #

def ref_forward(x_nchw, p):
    x = jnp.transpose(x_nchw, (0, 2, 3, 1))
    hi = jax.lax.Precision.HIGHEST

    def conv(x, w, stride, pad, groups=1):
        return jax.lax.conv_general_dilated(
            x, w, (stride, stride), ((pad, pad), (pad, pad)),
            dimension_numbers=('NHWC', 'HWIO', 'NHWC'),
            feature_group_count=groups, precision=hi)

    bn = lambda y, s, b: y * s + b
    relu = lambda y: jnp.maximum(y, 0.0)

    x = relu(bn(conv(x, p['conv1_w'], 2, 1), p['conv1_s'], p['conv1_b']))
    bc = x.shape[-1] // 2
    x1, x2 = x[..., :bc], x[..., bc:]
    y1 = bn(conv(x1, p['b1_dw_w'].reshape(3, 3, 1, bc), 2, 1, groups=bc),
            p['b1_dw_s'], p['b1_dw_b'])
    y1 = relu(bn(conv(y1, p['b1_pw_w'][None, None], 1, 0), p['b1_pw_s'], p['b1_pw_b']))
    y2 = relu(bn(conv(x2, p['b2_pw1_w'][None, None], 1, 0), p['b2_pw1_s'], p['b2_pw1_b']))
    mid = y2.shape[-1]
    y2 = bn(conv(y2, p['b2_dw_w'].reshape(3, 3, 1, mid), 2, 1, groups=mid),
            p['b2_dw_s'], p['b2_dw_b'])
    y2 = relu(bn(conv(y2, p['b2_pw2_w'][None, None], 1, 0), p['b2_pw2_s'], p['b2_pw2_b']))
    out = jnp.concatenate([y1, y2], axis=-1)
    out = channel_shuffle_nhwc(out, 2)
    return jnp.transpose(out, (0, 3, 1, 2))


# ----------------------------------- main ----------------------------------- #

if __name__ == "__main__":
    key = jax.random.PRNGKey(0)
    kx, kp = jax.random.split(key)

    N, Cin, H, W = 2, 4, 16, 16
    stem_channels, out_channels = 8, 8

    x = jax.random.normal(kx, (N, Cin, H, W), jnp.float32)
    params = init_params(kp, Cin, stem_channels, out_channels, expand_ratio=1)

    stem_fn = jax.jit(stem_forward)
    out = jax.block_until_ready(stem_fn(x, params))
    ref = jax.block_until_ready(ref_forward(x, params))

    assert out.shape == (N, out_channels, H // 4, W // 4), out.shape
    # bf16 MXU operands (f32 accumulation) vs. Precision.HIGHEST f32 reference
    assert jnp.allclose(out, ref, atol=4e-2, rtol=4e-2), \
        float(jnp.max(jnp.abs(out - ref)))

    print("KERNEL_OK")
</pallas_src>

<mosaic_0001>
module attributes {stable_mosaic.version = 11 : i64} {
  func.func @_stem_kernel(%arg0: i32, %arg1: i32, %arg2: memref<1x1x48x36xbf16, #tpu.memory_space<vmem>>, %arg3: memref<1x48x1xf32, #tpu.memory_space<vmem>>, %arg4: memref<8x1xf32, #tpu.memory_space<vmem>>, %arg5: memref<36x8xbf16, #tpu.memory_space<vmem>>, %arg6: memref<1x8xf32, #tpu.memory_space<vmem>>, %arg7: memref<8x12xbf16, #tpu.memory_space<vmem>>, %arg8: memref<1x12xf32, #tpu.memory_space<vmem>>, %arg9: memref<9x12xf32, #tpu.memory_space<vmem>>, %arg10: memref<1x12xf32, #tpu.memory_space<vmem>>, %arg11: memref<12x8xbf16, #tpu.memory_space<vmem>>, %arg12: memref<1x8xf32, #tpu.memory_space<vmem>>, %arg13: memref<1x1x8x8xf32, #tpu.memory_space<vmem>>) attributes {dimension_semantics = [#tpu.dimension_semantics<parallel>, #tpu.dimension_semantics<parallel>], iteration_bounds = array<i64: 2, 2>, scalar_prefetch = 0 : i64, scratch_operands = 0 : i64, tpu.core_type = #tpu.core_type<tc>, window_params = [{transform_indices = @transform_0, window_bounds = array<i64: 1, 1, 48, 36>}, {transform_indices = @transform_1, window_bounds = array<i64: 1, 48, 1>}, {pipeline_mode = #tpu.pipeline_mode<synchronous>, transform_indices = @transform_2, window_bounds = array<i64: 8, 1>}, {pipeline_mode = #tpu.pipeline_mode<synchronous>, transform_indices = @transform_3, window_bounds = array<i64: 36, 8>}, {pipeline_mode = #tpu.pipeline_mode<synchronous>, transform_indices = @transform_4, window_bounds = array<i64: 1, 8>}, {pipeline_mode = #tpu.pipeline_mode<synchronous>, transform_indices = @transform_5, window_bounds = array<i64: 8, 12>}, {pipeline_mode = #tpu.pipeline_mode<synchronous>, transform_indices = @transform_6, window_bounds = array<i64: 1, 12>}, {pipeline_mode = #tpu.pipeline_mode<synchronous>, transform_indices = @transform_7, window_bounds = array<i64: 9, 12>}, {pipeline_mode = #tpu.pipeline_mode<synchronous>, transform_indices = @transform_8, window_bounds = array<i64: 1, 12>}, {pipeline_mode = #tpu.pipeline_mode<synchronous>, transform_indices = @transform_9, window_bounds = array<i64: 12, 8>}, {pipeline_mode = #tpu.pipeline_mode<synchronous>, transform_indices = @transform_10, window_bounds = array<i64: 1, 8>}, {transform_indices = @transform_11, window_bounds = array<i64: 1, 1, 8, 8>}]} {
    %c0 = arith.constant 0 : index
    %c0_0 = arith.constant 0 : index
    %c0_1 = arith.constant 0 : index
    %c0_2 = arith.constant 0 : index
    %0 = vector.load %arg2[%c0, %c0_0, %c0_1, %c0_2] : memref<1x1x48x36xbf16, #tpu.memory_space<vmem>>, vector<1x1x48x36xbf16>
    %1 = vector.shape_cast %0 : vector<1x1x48x36xbf16> to vector<48x36xbf16>
    %c0_3 = arith.constant 0 : index
    %c0_4 = arith.constant 0 : index
    %2 = vector.load %arg5[%c0_3, %c0_4] : memref<36x8xbf16, #tpu.memory_space<vmem>>, vector<36x8xbf16>
    %cst = arith.constant dense<0.000000e+00> : vector<48x8xf32>
    %3 = tpu.matmul %1, %2, %cst {dimension_numbers = #tpu.dot_dimension_numbers<[1], [0], [0], [1], [0, 0, 1, 1], [], []>} : vector<48x36xbf16>, vector<36x8xbf16>, vector<48x8xf32> -> vector<48x8xf32>
    %c0_5 = arith.constant 0 : index
    %c0_6 = arith.constant 0 : index
    %4 = vector.load %arg6[%c0_5, %c0_6] : memref<1x8xf32, #tpu.memory_space<vmem>>, vector<1x8xf32>
    %5 = vector.broadcast %4 : vector<1x8xf32> to vector<48x8xf32>
    %6 = arith.addf %3, %5 : vector<48x8xf32>
    %cst_7 = arith.constant 0.000000e+00 : f32
    %7 = vector.broadcast %cst_7 : f32 to vector<48x8xf32>
    %8 = arith.maximumf %6, %7 : vector<48x8xf32>
    %9 = arith.truncf %8 : vector<48x8xf32> to vector<48x8xbf16>
    %c0_8 = arith.constant 0 : index
    %c0_9 = arith.constant 0 : index
    %10 = vector.load %arg7[%c0_8, %c0_9] : memref<8x12xbf16, #tpu.memory_space<vmem>>, vector<8x12xbf16>
    %cst_10 = arith.constant dense<0.000000e+00> : vector<48x12xf32>
    %11 = tpu.matmul %9, %10, %cst_10 {dimension_numbers = #tpu.dot_dimension_numbers<[1], [0], [0], [1], [0, 0, 1, 1], [], []>} : vector<48x8xbf16>, vector<8x12xbf16>, vector<48x12xf32> -> vector<48x12xf32>
    %c0_11 = arith.constant 0 : index
    %c0_12 = arith.constant 0 : index
    %12 = vector.load %arg8[%c0_11, %c0_12] : memref<1x12xf32, #tpu.memory_space<vmem>>, vector<1x12xf32>
    %13 = vector.broadcast %12 : vector<1x12xf32> to vector<48x12xf32>
    %14 = arith.addf %11, %13 : vector<48x12xf32>
    %cst_13 = arith.constant 0.000000e+00 : f32
    %15 = vector.broadcast %cst_13 : f32 to vector<48x12xf32>
    %16 = arith.maximumf %14, %15 : vector<48x12xf32>
    %c0_14 = arith.constant 0 : index
    %c0_15 = arith.constant 0 : index
    %c0_16 = arith.constant 0 : index
    %17 = vector.load %arg3[%c0_14, %c0_15, %c0_16] : memref<1x48x1xf32, #tpu.memory_space<vmem>>, vector<1x48x1xf32>
    %18 = vector.shape_cast %17 : vector<1x48x1xf32> to vector<48x1xf32>
    %19 = vector.broadcast %18 : vector<48x1xf32> to vector<48x12xf32>
    %20 = arith.mulf %16, %19 : vector<48x12xf32>
    %c0_17 = arith.constant 0 : index
    %c0_18 = arith.constant 0 : index
    %21 = vector.load %arg9[%c0_17, %c0_18] : memref<9x12xf32, #tpu.memory_space<vmem>>, vector<9x12xf32>
    %c0_19 = arith.constant 0 : index
    %c0_20 = arith.constant 0 : index
    %22 = vector.load %arg4[%c0_19, %c0_20] : memref<8x1xf32, #tpu.memory_space<vmem>>, vector<8x1xf32>
    %c0_21 = arith.constant 0 : index
    %c0_22 = arith.constant 0 : index
    %23 = vector.load %arg10[%c0_21, %c0_22] : memref<1x12xf32, #tpu.memory_space<vmem>>, vector<1x12xf32>
    %24 = vector.shape_cast %23 : vector<1x12xf32> to vector<1x12xf32>
    %25 = vector.broadcast %24 : vector<1x12xf32> to vector<8x12xf32>
    %26 = vector.extract_strided_slice %20 {offsets = [35, 0], sizes = [8, 12], strides = [1, 1]} : vector<48x12xf32> to vector<8x12xf32>
    %27 = vector.broadcast %22 : vector<8x1xf32> to vector<8x12xf32>
    %28 = arith.mulf %26, %27 : vector<8x12xf32>
    %29 = vector.extract_strided_slice %21 {offsets = [0, 0], sizes = [1, 12], strides = [1, 1]} : vector<9x12xf32> to vector<1x12xf32>
    %30 = vector.broadcast %29 : vector<1x12xf32> to vector<8x12xf32>
    %31 = arith.mulf %28, %30 : vector<8x12xf32>
    %32 = arith.addf %25, %31 : vector<8x12xf32>
    %33 = vector.extract_strided_slice %20 {offsets = [24, 0], sizes = [8, 12], strides = [1, 1]} : vector<48x12xf32> to vector<8x12xf32>
    %34 = vector.extract_strided_slice %21 {offsets = [1, 0], sizes = [1, 12], strides = [1, 1]} : vector<9x12xf32> to vector<1x12xf32>
    %35 = vector.broadcast %34 : vector<1x12xf32> to vector<8x12xf32>
    %36 = arith.mulf %33, %35 : vector<8x12xf32>
    %37 = arith.addf %32, %36 : vector<8x12xf32>
    %38 = vector.extract_strided_slice %20 {offsets = [36, 0], sizes = [8, 12], strides = [1, 1]} : vector<48x12xf32> to vector<8x12xf32>
    %39 = vector.extract_strided_slice %21 {offsets = [2, 0], sizes = [1, 12], strides = [1, 1]} : vector<9x12xf32> to vector<1x12xf32>
    %40 = vector.broadcast %39 : vector<1x12xf32> to vector<8x12xf32>
    %41 = arith.mulf %38, %40 : vector<8x12xf32>
    %42 = arith.addf %37, %41 : vector<8x12xf32>
    %43 = vector.extract_strided_slice %20 {offsets = [15, 0], sizes = [8, 12], strides = [1, 1]} : vector<48x12xf32> to vector<8x12xf32>
    %44 = vector.broadcast %22 : vector<8x1xf32> to vector<8x12xf32>
    %45 = arith.mulf %43, %44 : vector<8x12xf32>
    %46 = vector.extract_strided_slice %21 {offsets = [3, 0], sizes = [1, 12], strides = [1, 1]} : vector<9x12xf32> to vector<1x12xf32>
    %47 = vector.broadcast %46 : vector<1x12xf32> to vector<8x12xf32>
    %48 = arith.mulf %45, %47 : vector<8x12xf32>
    %49 = arith.addf %42, %48 : vector<8x12xf32>
    %50 = vector.extract_strided_slice %20 {offsets = [4, 0], sizes = [8, 12], strides = [1, 1]} : vector<48x12xf32> to vector<8x12xf32>
    %51 = vector.extract_strided_slice %21 {offsets = [4, 0], sizes = [1, 12], strides = [1, 1]} : vector<9x12xf32> to vector<1x12xf32>
    %52 = vector.broadcast %51 : vector<1x12xf32> to vector<8x12xf32>
    %53 = arith.mulf %50, %52 : vector<8x12xf32>
    %54 = arith.addf %49, %53 : vector<8x12xf32>
    %55 = vector.extract_strided_slice %20 {offsets = [16, 0], sizes = [8, 12], strides = [1, 1]} : vector<48x12xf32> to vector<8x12xf32>
    %56 = vector.extract_strided_slice %21 {offsets = [5, 0], sizes = [1, 12], strides = [1, 1]} : vector<9x12xf32> to vector<1x12xf32>
    %57 = vector.broadcast %56 : vector<1x12xf32> to vector<8x12xf32>
    %58 = arith.mulf %55, %57 : vector<8x12xf32>
    %59 = arith.addf %54, %58 : vector<8x12xf32>
    %60 = vector.extract_strided_slice %20 {offsets = [39, 0], sizes = [8, 12], strides = [1, 1]} : vector<48x12xf32> to vector<8x12xf32>
    %61 = vector.broadcast %22 : vector<8x1xf32> to vector<8x12xf32>
    %62 = arith.mulf %60, %61 : vector<8x12xf32>
    %63 = vector.extract_strided_slice %21 {offsets = [6, 0], sizes = [1, 12], strides = [1, 1]} : vector<9x12xf32> to vector<1x12xf32>
    %64 = vector.broadcast %63 : vector<1x12xf32> to vector<8x12xf32>
    %65 = arith.mulf %62, %64 : vector<8x12xf32>
    %66 = arith.addf %59, %65 : vector<8x12xf32>
    %67 = vector.extract_strided_slice %20 {offsets = [28, 0], sizes = [8, 12], strides = [1, 1]} : vector<48x12xf32> to vector<8x12xf32>
    %68 = vector.extract_strided_slice %21 {offsets = [7, 0], sizes = [1, 12], strides = [1, 1]} : vector<9x12xf32> to vector<1x12xf32>
    %69 = vector.broadcast %68 : vector<1x12xf32> to vector<8x12xf32>
    %70 = arith.mulf %67, %69 : vector<8x12xf32>
    %71 = arith.addf %66, %70 : vector<8x12xf32>
    %72 = vector.extract_strided_slice %20 {offsets = [40, 0], sizes = [8, 12], strides = [1, 1]} : vector<48x12xf32> to vector<8x12xf32>
    %73 = vector.extract_strided_slice %21 {offsets = [8, 0], sizes = [1, 12], strides = [1, 1]} : vector<9x12xf32> to vector<1x12xf32>
    %74 = vector.broadcast %73 : vector<1x12xf32> to vector<8x12xf32>
    %75 = arith.mulf %72, %74 : vector<8x12xf32>
    %76 = arith.addf %71, %75 : vector<8x12xf32>
    %77 = arith.truncf %76 : vector<8x12xf32> to vector<8x12xbf16>
    %c0_23 = arith.constant 0 : index
    %c0_24 = arith.constant 0 : index
    %78 = vector.load %arg11[%c0_23, %c0_24] : memref<12x8xbf16, #tpu.memory_space<vmem>>, vector<12x8xbf16>
    %cst_25 = arith.constant dense<0.000000e+00> : vector<8x8xf32>
    %79 = tpu.matmul %77, %78, %cst_25 {dimension_numbers = #tpu.dot_dimension_numbers<[1], [0], [0], [1], [0, 0, 1, 1], [], []>} : vector<8x12xbf16>, vector<12x8xbf16>, vector<8x8xf32> -> vector<8x8xf32>
    %c0_26 = arith.constant 0 : index
    %c0_27 = arith.constant 0 : index
    %80 = vector.load %arg12[%c0_26, %c0_27] : memref<1x8xf32, #tpu.memory_space<vmem>>, vector<1x8xf32>
    %81 = vector.broadcast %80 : vector<1x8xf32> to vector<8x8xf32>
    %82 = arith.addf %79, %81 : vector<8x8xf32>
    %cst_28 = arith.constant 0.000000e+00 : f32
    %83 = vector.broadcast %cst_28 : f32 to vector<8x8xf32>
    %84 = arith.maximumf %82, %83 : vector<8x8xf32>
    %c0_29 = arith.constant 0 : index
    %c0_30 = arith.constant 0 : index
    %c0_31 = arith.constant 0 : index
    %c0_32 = arith.constant 0 : index
    %85 = vector.load %arg13[%c0_29, %c0_30, %c0_31, %c0_32] : memref<1x1x8x8xf32, #tpu.memory_space<vmem>>, vector<1x1x8x8xf32>
    %86 = vector.shape_cast %85 : vector<1x1x8x8xf32> to vector<8x8xf32>
    %87 = vector.shape_cast %84 : vector<8x8xf32> to vector<1x1x8x8xf32>
    tpu.vector_store %arg13[%c0_29, %c0_30, %c0_31, %c0_32], %87 {strides = array<i32>} : memref<1x1x8x8xf32, #tpu.memory_space<vmem>>, vector<1x1x8x8xf32>,
    return
  }
  func.func @transform_0(%arg0: i32, %arg1: i32) -> (i32, i32, i32, i32) {
    %c0_i32 = arith.constant 0 : i32
    %c0_i32_0 = arith.constant 0 : i32
    %c0_i32_1 = arith.constant 0 : i32
    return %arg0, %arg1, %c0_i32, %c0_i32_0 : i32, i32, i32, i32
  }
  func.func @transform_1(%arg0: i32, %arg1: i32) -> (i32, i32, i32) {
    %c0_i32 = arith.constant 0 : i32
    %c0_i32_0 = arith.constant 0 : i32
    %c0_i32_1 = arith.constant 0 : i32
    return %arg1, %c0_i32, %c0_i32_0 : i32, i32, i32
  }
  func.func @transform_2(%arg0: i32, %arg1: i32) -> (i32, i32) {
    %c0_i32 = arith.constant 0 : i32
    %c0_i32_0 = arith.constant 0 : i32
    %c0_i32_1 = arith.constant 0 : i32
    return %c0_i32, %c0_i32_0 : i32, i32
  }
  func.func @transform_3(%arg0: i32, %arg1: i32) -> (i32, i32) {
    %c0_i32 = arith.constant 0 : i32
    %c0_i32_0 = arith.constant 0 : i32
    %c0_i32_1 = arith.constant 0 : i32
    return %c0_i32, %c0_i32_0 : i32, i32
  }
  func.func @transform_4(%arg0: i32, %arg1: i32) -> (i32, i32) {
    %c0_i32 = arith.constant 0 : i32
    %c0_i32_0 = arith.constant 0 : i32
    %c0_i32_1 = arith.constant 0 : i32
    return %c0_i32, %c0_i32_0 : i32, i32
  }
  func.func @transform_5(%arg0: i32, %arg1: i32) -> (i32, i32) {
    %c0_i32 = arith.constant 0 : i32
    %c0_i32_0 = arith.constant 0 : i32
    %c0_i32_1 = arith.constant 0 : i32
    return %c0_i32, %c0_i32_0 : i32, i32
  }
  func.func @transform_6(%arg0: i32, %arg1: i32) -> (i32, i32) {
    %c0_i32 = arith.constant 0 : i32
    %c0_i32_0 = arith.constant 0 : i32
    %c0_i32_1 = arith.constant 0 : i32
    return %c0_i32, %c0_i32_0 : i32, i32
  }
  func.func @transform_7(%arg0: i32, %arg1: i32) -> (i32, i32) {
    %c0_i32 = arith.constant 0 : i32
    %c0_i32_0 = arith.constant 0 : i32
    %c0_i32_1 = arith.constant 0 : i32
    return %c0_i32, %c0_i32_0 : i32, i32
  }
  func.func @transform_8(%arg0: i32, %arg1: i32) -> (i32, i32) {
    %c0_i32 = arith.constant 0 : i32
    %c0_i32_0 = arith.constant 0 : i32
    %c0_i32_1 = arith.constant 0 : i32
    return %c0_i32, %c0_i32_0 : i32, i32
  }
  func.func @transform_9(%arg0: i32, %arg1: i32) -> (i32, i32) {
    %c0_i32 = arith.constant 0 : i32
    %c0_i32_0 = arith.constant 0 : i32
    %c0_i32_1 = arith.constant 0 : i32
    return %c0_i32, %c0_i32_0 : i32, i32
  }
  func.func @transform_10(%arg0: i32, %arg1: i32) -> (i32, i32) {
    %c0_i32 = arith.constant 0 : i32
    %c0_i32_0 = arith.constant 0 : i32
    %c0_i32_1 = arith.constant 0 : i32
    return %c0_i32, %c0_i32_0 : i32, i32
  }
  func.func @transform_11(%arg0: i32, %arg1: i32) -> (i32, i32, i32, i32) {
    %c0_i32 = arith.constant 0 : i32
    %c0_i32_0 = arith.constant 0 : i32
    %c0_i32_1 = arith.constant 0 : i32
    return %arg0, %arg1, %c0_i32, %c0_i32_0 : i32, i32, i32, i32
  }
}

</mosaic_0001>

<llo_original>
// kernel: stem_forward.1
$region0: #{stem_forward.1}
  #allocation0 [shape = 'u32[]', space=smem, size = 0x4, offset = 0x4, fixed_abs, tag = 'smem constant byte address 0x4 - core index']
  #allocation1 [shape = 'u32[144,128]{1,0:T(1,128)}', space=vmem, size = 0x12000, scoped, tag = 'internal scratch']
  %s0 = inlined_call_operand.vmem [shape: bf16[2,2,48,36], index: 0, kind: input, shape index: {}]
  %s1 = inlined_call_operand.vmem [shape: f32[2,48,1], index: 1, kind: input, shape index: {}]
  %s2 = inlined_call_operand.vmem [shape: f32[8,1], index: 2, kind: input, shape index: {}]
  %s3 = inlined_call_operand.vmem [shape: bf16[36,8], index: 3, kind: input, shape index: {}]
  %s4 = inlined_call_operand.vmem [shape: f32[1,8], index: 4, kind: input, shape index: {}]
  %s5 = inlined_call_operand.vmem [shape: bf16[8,12], index: 5, kind: input, shape index: {}]
  %s6 = inlined_call_operand.vmem [shape: f32[1,12], index: 6, kind: input, shape index: {}]
  %s7 = inlined_call_operand.vmem [shape: f32[9,12], index: 7, kind: input, shape index: {}]
  %s8 = inlined_call_operand.vmem [shape: f32[1,12], index: 8, kind: input, shape index: {}]
  %s9 = inlined_call_operand.vmem [shape: bf16[12,8], index: 9, kind: input, shape index: {}]
  %s10 = inlined_call_operand.vmem [shape: f32[1,8], index: 10, kind: input, shape index: {}]
  %s11 = inlined_call_operand.hbm [shape: f32[2,2,8,8], index: 11, kind: output, shape index: {}]
  %s12 = sld [smem:[#allocation0]]
  $region77: #{stem_forward.1} parent=0
    _
  %s14 = ssub.s32 1, %s12
  %s15 = scalar_select 0, %s14, %s12
  $region1: #{stem_forward.1} parent=0
    #allocation2 [shape = 'u8[8192]{0}', space=vmem, size = 0x2000, scoped, tag = 'output window, operand 0']
    #allocation3 [shape = 's32[2]{0}', space=sflag, size = 0x8, scoped, tag = 'scoped memory for stem_forward.1']
    %16 = vsyncpa [#allocation3], 0
    %s17 = scalar_lea.sflag [#allocation3], 1
    %18 = vsyncpa %s17, 0
    loop: start=0, step=1, limit=6
    $region2: #{stem_forward.1} parent=1 // loop_pre_header
      _
    $region3: #{stem_forward.1} parent=1 // loop_header
      %s20 = sphi 0, %s24
      %p21 = scmp.ge.s32.totalorder %s20, 6
      %s27 = sphi 0, %s39
      %s28 = sphi 0, %s35
      %s29 = sphi 0, %s27
      %s30 = sphi 0, %s28
      %s31 = sphi 0, %s29
      %s32 = sphi 0, %s30
      %s44 = sphi 0, %s46
      %s47 = sphi 0, %s44
      %s48 = sphi 0, %s47
      %s64 = sphi 0, %s48
      %s70 = sphi 0, %s72
      %s73 = sphi 0, %s70
      %s74 = sphi 0, %s73
      %s90 = sphi 0, %s74
      %s94 = sphi 0, %s94
      %s96 = sphi 0, %s94
      %s97 = sphi 0, %s96
      %s111 = sphi 0, %s97
      %s115 = sphi 0, %s115
      %s117 = sphi 0, %s115
      %s118 = sphi 0, %s117
      %s132 = sphi 0, %s118
      %s136 = sphi 0, %s136
      %s138 = sphi 0, %s136
      %s139 = sphi 0, %s138
      %s153 = sphi 0, %s139
      %s157 = sphi 0, %s157
      %s159 = sphi 0, %s157
      %s160 = sphi 0, %s159
      %s174 = sphi 0, %s160
      %s178 = sphi 0, %s178
      %s180 = sphi 0, %s178
      %s181 = sphi 0, %s180
      %s195 = sphi 0, %s181
      %s199 = sphi 0, %s199
      %s201 = sphi 0, %s199
      %s202 = sphi 0, %s201
      %s216 = sphi 0, %s202
      %s220 = sphi 0, %s220
      %s222 = sphi 0, %s220
      %s223 = sphi 0, %s222
      %s237 = sphi 0, %s223
      %s241 = sphi 0, %s241
      %s243 = sphi 0, %s241
      %s244 = sphi 0, %s243
      %s258 = sphi 0, %s244
      %s262 = sphi 0, %s262
      %s264 = sphi 0, %s262
      %s265 = sphi 0, %s264
      %s279 = sphi 0, %s265
      %s287 = sphi 0, %s289
      %s290 = sphi 0, %s287
      %s291 = sphi 0, %s290
      %s307 = sphi 0, %s291
    $region4: #{stem_forward.1} parent=1 // loop_header_branch
      %23 = sbr.rel (%p21) target = $region8
    $region5: #{stem_forward.1} parent=1 // loop_body
      %s25 = ssub.s32 %s20, 1
      %s26 = ssub.s32 %s20, 2
      %s33 = sadd.s32 1, %s28
      %p34 = scmp.ge.s32.totalorder %s33, 2
      %s35 = scalar_select %p34, 0, %s33
      %s36 = sadd.s32 1, %s27
      %s37 = scalar_select %p34, %s36, %s27
      %p38 = scmp.ge.s32.totalorder %s37, 2
      %s39 = scalar_select %p38, 0, %s37
      %s40 = ssub.s32 %s27, %s39
      %s41 = ssub.s32 %s28, %s35
      %s42 = sor.u32 %s40, %s41
      %p43 = scmp.eq.s32.totalorder %s42, 0
      %s45 = sadd.s32 %s44, 1
      %s46 = scalar_select %p43, %s44, %s45
      %p49 = pneg %p43
      %p50 = scmp.eq.s32.totalorder %s20, 3
      %p51 = por %p49, %p50
      %p52 = scmp.ne.s32.totalorder %s44, %s47
      %p53 = scmp.eq.s32.totalorder %s20, 0
      %p54 = por %p52, %p53
      %p55 = scmp.ne.s32.totalorder %s44, %s47
      %p56 = scmp.eq.s32.totalorder %s25, 3
      %p57 = por %p55, %p56
      %p58 = scmp.ne.s32.totalorder %s47, %s48
      %p59 = scmp.eq.s32.totalorder %s25, 0
      %p60 = por %p58, %p59
      %p61 = scmp.ne.s32.totalorder %s47, %s48
      %p62 = scmp.eq.s32.totalorder %s26, 3
      %p63 = por %p61, %p62
      %p65 = scmp.ne.s32.totalorder %s48, %s64
      %p66 = scmp.eq.s32.totalorder %s26, 0
      %p67 = por %p65, %p66
      %s68 = ssub.s32 %s28, %s35
      %p69 = scmp.eq.s32.totalorder %s68, 0
      %s71 = sadd.s32 %s70, 1
      %s72 = scalar_select %p69, %s70, %s71
      %p75 = pneg %p69
      %p76 = scmp.eq.s32.totalorder %s20, 3
      %p77 = por %p75, %p76
      %p78 = scmp.ne.s32.totalorder %s70, %s73
      %p79 = scmp.eq.s32.totalorder %s20, 0
      %p80 = por %p78, %p79
      %p81 = scmp.ne.s32.totalorder %s70, %s73
      %p82 = scmp.eq.s32.totalorder %s25, 3
      %p83 = por %p81, %p82
      %p84 = scmp.ne.s32.totalorder %s73, %s74
      %p85 = scmp.eq.s32.totalorder %s25, 0
      %p86 = por %p84, %p85
      %p87 = scmp.ne.s32.totalorder %s73, %s74
      %p88 = scmp.eq.s32.totalorder %s26, 3
      %p89 = por %p87, %p88
      %p91 = scmp.ne.s32.totalorder %s74, %s90
      %p92 = scmp.eq.s32.totalorder %s26, 0
      %p93 = por %p91, %p92
      %s95 = sadd.s32 %s94, 1
      %p98 = scmp.eq.s32.totalorder %s20, 3
      %p99 = scmp.ne.s32.totalorder %s94, %s96
      %p100 = scmp.eq.s32.totalorder %s20, 0
      %p101 = por %p99, %p100
      %p102 = scmp.ne.s32.totalorder %s94, %s96
      %p103 = scmp.eq.s32.totalorder %s25, 3
      %p104 = por %p102, %p103
      %p105 = scmp.ne.s32.totalorder %s96, %s97
      %p106 = scmp.eq.s32.totalorder %s25, 0
      %p107 = por %p105, %p106
      %p108 = scmp.ne.s32.totalorder %s96, %s97
      %p109 = scmp.eq.s32.totalorder %s26, 3
      %p110 = por %p108, %p109
      %p112 = scmp.ne.s32.totalorder %s97, %s111
      %p113 = scmp.eq.s32.totalorder %s26, 0
      %p114 = por %p112, %p113
      %s116 = sadd.s32 %s115, 1
      %p119 = scmp.eq.s32.totalorder %s20, 3
      %p120 = scmp.ne.s32.totalorder %s115, %s117
      %p121 = scmp.eq.s32.totalorder %s20, 0
      %p122 = por %p120, %p121
      %p123 = scmp.ne.s32.totalorder %s115, %s117
      %p124 = scmp.eq.s32.totalorder %s25, 3
      %p125 = por %p123, %p124
      %p126 = scmp.ne.s32.totalorder %s117, %s118
      %p127 = scmp.eq.s32.totalorder %s25, 0
      %p128 = por %p126, %p127
      %p129 = scmp.ne.s32.totalorder %s117, %s118
      %p130 = scmp.eq.s32.totalorder %s26, 3
      %p131 = por %p129, %p130
      %p133 = scmp.ne.s32.totalorder %s118, %s132
      %p134 = scmp.eq.s32.totalorder %s26, 0
      %p135 = por %p133, %p134
      %s137 = sadd.s32 %s136, 1
      %p140 = scmp.eq.s32.totalorder %s20, 3
      %p141 = scmp.ne.s32.totalorder %s136, %s138
      %p142 = scmp.eq.s32.totalorder %s20, 0
      %p143 = por %p141, %p142
      %p144 = scmp.ne.s32.totalorder %s136, %s138
      %p145 = scmp.eq.s32.totalorder %s25, 3
      %p146 = por %p144, %p145
      %p147 = scmp.ne.s32.totalorder %s138, %s139
      %p148 = scmp.eq.s32.totalorder %s25, 0
      %p149 = por %p147, %p148
      %p150 = scmp.ne.s32.totalorder %s138, %s139
      %p151 = scmp.eq.s32.totalorder %s26, 3
      %p152 = por %p150, %p151
      %p154 = scmp.ne.s32.totalorder %s139, %s153
      %p155 = scmp.eq.s32.totalorder %s26, 0
      %p156 = por %p154, %p155
      %s158 = sadd.s32 %s157, 1
      %p161 = scmp.eq.s32.totalorder %s20, 3
      %p162 = scmp.ne.s32.totalorder %s157, %s159
      %p163 = scmp.eq.s32.totalorder %s20, 0
      %p164 = por %p162, %p163
      %p165 = scmp.ne.s32.totalorder %s157, %s159
      %p166 = scmp.eq.s32.totalorder %s25, 3
      %p167 = por %p165, %p166
      %p168 = scmp.ne.s32.totalorder %s159, %s160
      %p169 = scmp.eq.s32.totalorder %s25, 0
      %p170 = por %p168, %p169
      %p171 = scmp.ne.s32.totalorder %s159, %s160
      %p172 = scmp.eq.s32.totalorder %s26, 3
      %p173 = por %p171, %p172
      %p175 = scmp.ne.s32.totalorder %s160, %s174
      %p176 = scmp.eq.s32.totalorder %s26, 0
      %p177 = por %p175, %p176
      %s179 = sadd.s32 %s178, 1
      %p182 = scmp.eq.s32.totalorder %s20, 3
      %p183 = scmp.ne.s32.totalorder %s178, %s180
      %p184 = scmp.eq.s32.totalorder %s20, 0
      %p185 = por %p183, %p184
      %p186 = scmp.ne.s32.totalorder %s178, %s180
      %p187 = scmp.eq.s32.totalorder %s25, 3
      %p188 = por %p186, %p187
      %p189 = scmp.ne.s32.totalorder %s180, %s181
      %p190 = scmp.eq.s32.totalorder %s25, 0
      %p191 = por %p189, %p190
      %p192 = scmp.ne.s32.totalorder %s180, %s181
      %p193 = scmp.eq.s32.totalorder %s26, 3
      %p194 = por %p192, %p193
      %p196 = scmp.ne.s32.totalorder %s181, %s195
      %p197 = scmp.eq.s32.totalorder %s26, 0
      %p198 = por %p196, %p197
      %s200 = sadd.s32 %s199, 1
      %p203 = scmp.eq.s32.totalorder %s20, 3
      %p204 = scmp.ne.s32.totalorder %s199, %s201
      %p205 = scmp.eq.s32.totalorder %s20, 0
      %p206 = por %p204, %p205
      %p207 = scmp.ne.s32.totalorder %s199, %s201
      %p208 = scmp.eq.s32.totalorder %s25, 3
      %p209 = por %p207, %p208
      %p210 = scmp.ne.s32.totalorder %s201, %s202
      %p211 = scmp.eq.s32.totalorder %s25, 0
      %p212 = por %p210, %p211
      %p213 = scmp.ne.s32.totalorder %s201, %s202
      %p214 = scmp.eq.s32.totalorder %s26, 3
      %p215 = por %p213, %p214
      %p217 = scmp.ne.s32.totalorder %s202, %s216
      %p218 = scmp.eq.s32.totalorder %s26, 0
      %p219 = por %p217, %p218
      %s221 = sadd.s32 %s220, 1
      %p224 = scmp.eq.s32.totalorder %s20, 3
      %p225 = scmp.ne.s32.totalorder %s220, %s222
      %p226 = scmp.eq.s32.totalorder %s20, 0
      %p227 = por %p225, %p226
      %p228 = scmp.ne.s32.totalorder %s220, %s222
      %p229 = scmp.eq.s32.totalorder %s25, 3
      %p230 = por %p228, %p229
      %p231 = scmp.ne.s32.totalorder %s222, %s223
      %p232 = scmp.eq.s32.totalorder %s25, 0
      %p233 = por %p231, %p232
      %p234 = scmp.ne.s32.totalorder %s222, %s223
      %p235 = scmp.eq.s32.totalorder %s26, 3
      %p236 = por %p234, %p235
      %p238 = scmp.ne.s32.totalorder %s223, %s237
      %p239 = scmp.eq.s32.totalorder %s26, 0
      %p240 = por %p238, %p239
      %s242 = sadd.s32 %s241, 1
      %p245 = scmp.eq.s32.totalorder %s20, 3
      %p246 = scmp.ne.s32.totalorder %s241, %s243
      %p247 = scmp.eq.s32.totalorder %s20, 0
      %p248 = por %p246, %p247
      %p249 = scmp.ne.s32.totalorder %s241, %s243
      %p250 = scmp.eq.s32.totalorder %s25, 3
      %p251 = por %p249, %p250
      %p252 = scmp.ne.s32.totalorder %s243, %s244
      %p253 = scmp.eq.s32.totalorder %s25, 0
      %p254 = por %p252, %p253
      %p255 = scmp.ne.s32.totalorder %s243, %s244
      %p256 = scmp.eq.s32.totalorder %s26, 3
      %p257 = por %p255, %p256
      %p259 = scmp.ne.s32.totalorder %s244, %s258
      %p260 = scmp.eq.s32.totalorder %s26, 0
      %p261 = por %p259, %p260
      %s263 = sadd.s32 %s262, 1
      %p266 = scmp.eq.s32.totalorder %s20, 3
      %p267 = scmp.ne.s32.totalorder %s262, %s264
      %p268 = scmp.eq.s32.totalorder %s20, 0
      %p269 = por %p267, %p268
      %p270 = scmp.ne.s32.totalorder %s262, %s264
      %p271 = scmp.eq.s32.totalorder %s25, 3
      %p272 = por %p270, %p271
      %p273 = scmp.ne.s32.totalorder %s264, %s265
      %p274 = scmp.eq.s32.totalorder %s25, 0
      %p275 = por %p273, %p274
      %p276 = scmp.ne.s32.totalorder %s264, %s265
      %p277 = scmp.eq.s32.totalorder %s26, 3
      %p278 = por %p276, %p277
      %p280 = scmp.ne.s32.totalorder %s265, %s279
      %p281 = scmp.eq.s32.totalorder %s26, 0
      %p282 = por %p280, %p281
      %s283 = ssub.s32 %s27, %s39
      %s284 = ssub.s32 %s28, %s35
      %s285 = sor.u32 %s283, %s284
      %p286 = scmp.eq.s32.totalorder %s285, 0
      %s288 = sadd.s32 %s287, 1
      %s289 = scalar_select %p286, %s287, %s288
      %p292 = pneg %p286
      %p293 = scmp.eq.s32.totalorder %s20, 3
      %p294 = por %p292, %p293
      %p295 = scmp.ne.s32.totalorder %s287, %s290
      %p296 = scmp.eq.s32.totalorder %s20, 0
      %p297 = por %p295, %p296
      %p298 = scmp.ne.s32.totalorder %s287, %s290
      %p299 = scmp.eq.s32.totalorder %s25, 3
      %p300 = por %p298, %p299
      %p301 = scmp.ne.s32.totalorder %s290, %s291
      %p302 = scmp.eq.s32.totalorder %s25, 0
      %p303 = por %p301, %p302
      %p304 = scmp.ne.s32.totalorder %s290, %s291
      %p305 = scmp.eq.s32.totalorder %s26, 3
      %p306 = por %p304, %p305
      %p308 = scmp.ne.s32.totalorder %s291, %s307
      %p309 = scmp.eq.s32.totalorder %s26, 0
      %p310 = por %p308, %p309
      %p311 = scmp.le.s32.totalorder 1, %s20
      %p312 = scmp.lt.s32.totalorder %s20, 5
      %p313 = pnand %p311, %p312
      %p314 = pneg %p313
      // Predicated region
      $region9: #{stem_forward.1} parent=5 // pred_check
        _
      $region10: #{stem_forward.1} parent=5 // pred_check_branch
        %316 = sbr.rel (%p313) target = $region12
      $region11: #{stem_forward.1} parent=5 // pred_region
        %s317 = ssub.s32 %s20, 1
        // Predicated region
        $region13: #{stem_forward.1} parent=11 // pred_check
          %p318 = pneg %p107
        $region14: #{stem_forward.1} parent=11 // pred_check_branch
          %320 = sbr.rel (%p318) target = $region16
        $region15: #{stem_forward.1} parent=11 // pred_region
          _
        $region16: #{stem_forward.1} parent=11 // pred_fallthru
          _
        // Predicated region
        $region17: #{stem_forward.1} parent=11 // pred_check
          %p321 = pneg %p128
        $region18: #{stem_forward.1} parent=11 // pred_check_branch
          %323 = sbr.rel (%p321) target = $region20
        $region19: #{stem_forward.1} parent=11 // pred_region
          _
        $region20: #{stem_forward.1} parent=11 // pred_fallthru
          _
        // Predicated region
        $region21: #{stem_forward.1} parent=11 // pred_check
          %p324 = pneg %p149
        $region22: #{stem_forward.1} parent=11 // pred_check_branch
          %326 = sbr.rel (%p324) target = $region24
        $region23: #{stem_forward.1} parent=11 // pred_region
          _
        $region24: #{stem_forward.1} parent=11 // pred_fallthru
          _
        // Predicated region
        $region25: #{stem_forward.1} parent=11 // pred_check
          %p327 = pneg %p170
        $region26: #{stem_forward.1} parent=11 // pred_check_branch
          %329 = sbr.rel (%p327) target = $region28
        $region27: #{stem_forward.1} parent=11 // pred_region
          _
        $region28: #{stem_forward.1} parent=11 // pred_fallthru
          _
        // Predicated region
        $region29: #{stem_forward.1} parent=11 // pred_check
          %p330 = pneg %p191
        $region30: #{stem_forward.1} parent=11 // pred_check_branch
          %332 = sbr.rel (%p330) target = $region32
        $region31: #{stem_forward.1} parent=11 // pred_region
          _
        $region32: #{stem_forward.1} parent=11 // pred_fallthru
          _
        // Predicated region
        $region33: #{stem_forward.1} parent=11 // pred_check
          %p333 = pneg %p212
        $region34: #{stem_forward.1} parent=11 // pred_check_branch
          %335 = sbr.rel (%p333) target = $region36
        $region35: #{stem_forward.1} parent=11 // pred_region
          _
        $region36: #{stem_forward.1} parent=11 // pred_fallthru
          _
        // Predicated region
        $region37: #{stem_forward.1} parent=11 // pred_check
          %p336 = pneg %p233
        $region38: #{stem_forward.1} parent=11 // pred_check_branch
          %338 = sbr.rel (%p336) target = $region40
        $region39: #{stem_forward.1} parent=11 // pred_region
          _
        $region40: #{stem_forward.1} parent=11 // pred_fallthru
          _
        // Predicated region
        $region41: #{stem_forward.1} parent=11 // pred_check
          %p339 = pneg %p254
        $region42: #{stem_forward.1} parent=11 // pred_check_branch
          %341 = sbr.rel (%p339) target = $region44
        $region43: #{stem_forward.1} parent=11 // pred_region
          _
        $region44: #{stem_forward.1} parent=11 // pred_fallthru
          _
        // Predicated region
        $region45: #{stem_forward.1} parent=11 // pred_check
          %p342 = pneg %p275
        $region46: #{stem_forward.1} parent=11 // pred_check_branch
          %344 = sbr.rel (%p342) target = $region48
        $region47: #{stem_forward.1} parent=11 // pred_region
          _
        $region48: #{stem_forward.1} parent=11 // pred_fallthru
          _
      $region12: #{stem_forward.1} parent=5 // pred_fallthru
        _
      %p345 = scmp.lt.s32.totalorder %s20, 4
      // Predicated region
      $region49: #{stem_forward.1} parent=5 // pred_check
        %p346 = pneg %p345
      $region50: #{stem_forward.1} parent=5 // pred_check_branch
        %348 = sbr.rel (%p346) target = $region52
      $region51: #{stem_forward.1} parent=5 // pred_region
        // Predicated region
        $region53: #{stem_forward.1} parent=51 // pred_check
          %p349 = pneg %p54
        $region54: #{stem_forward.1} parent=51 // pred_check_branch
          %351 = sbr.rel (%p349) target = $region56
        $region55: #{stem_forward.1} parent=51 // pred_region
          %p352 = scmp.lt.s32.totalorder %s27, 1
          %s353 = scalar_select %p352, %s27, 1
          %p354 = scmp.lt.s32.totalorder %s28, 1
          %s355 = scalar_select %p354, %s28, 1
          %s356 = smul.addr %s355, 6
          %s357 = smul.addr %s353, 12
          %s358 = sadd.s32 %s356, %s357
          %s359 = smul.addr %s358, 4
          %s360 = scalar_lea.vmem %s0, %s359
        $region56: #{stem_forward.1} parent=51 // pred_fallthru
          _
        // Predicated region
        $region57: #{stem_forward.1} parent=51 // pred_check
          %p361 = pneg %p80
        $region58: #{stem_forward.1} parent=51 // pred_check_branch
          %363 = sbr.rel (%p361) target = $region60
        $region59: #{stem_forward.1} parent=51 // pred_region
          %p364 = scmp.lt.s32.totalorder %s28, 1
          %s365 = scalar_select %p364, %s28, 1
          %s366 = smul.addr %s365, 6
          %s367 = smul.addr %s366, 8
          %s368 = scalar_lea.vmem %s1, %s367
        $region60: #{stem_forward.1} parent=51 // pred_fallthru
          _
      $region52: #{stem_forward.1} parent=5 // pred_fallthru
        _
      %p369 = scmp.le.s32.totalorder 1, %s20
      %p370 = scmp.lt.s32.totalorder %s20, 5
      %p371 = pnand %p369, %p370
      %p372 = pneg %p371
      // Predicated region
      $region61: #{stem_forward.1} parent=5 // pred_check
        _
      $region62: #{stem_forward.1} parent=5 // pred_check_branch
        %374 = sbr.rel (%p371) target = $region64
      $region63: #{stem_forward.1} parent=5 // pred_region
        %s375 = ssub.s32 %s20, 1
        %p376 = scmp.lt.s32.totalorder %s29, 1
        %s377 = scalar_select %p376, %s29, 1
        %p378 = scmp.lt.s32.totalorder %s30, 1
        %s379 = scalar_select %p378, %s30, 1
        %s380 = smul.addr %s379, 6
        %s381 = smul.addr %s377, 12
        %s382 = sadd.s32 %s380, %s381
        %s383 = smul.addr %s382, 4
        %s384 = scalar_lea.vmem %s0, %s383
        %p385 = pneg %p60
        %p386 = pneg %p57
        %p387 = scmp.lt.s32.totalorder %s30, 1
        %s388 = scalar_select %p387, %s30, 1
        %s389 = smul.addr %s388, 6
        %s390 = smul.addr %s389, 8
        %s391 = scalar_lea.vmem %s1, %s390
        %p392 = pneg %p86
        %p393 = pneg %p83
        %p394 = pneg %p107
        %p395 = pneg %p104
        %p396 = pneg %p128
        %p397 = pneg %p125
        %p398 = pneg %p149
        %p399 = pneg %p146
        %p400 = pneg %p170
        %p401 = pneg %p167
        %p402 = pneg %p191
        %p403 = pneg %p188
        %p404 = pneg %p212
        %p405 = pneg %p209
        %p406 = pneg %p233
        %p407 = pneg %p230
        %p408 = pneg %p254
        %p409 = pneg %p251
        %p410 = pneg %p275
        %p411 = pneg %p272
        %p412 = pneg %p303
        %p413 = pneg %p300
        %s414 = sand.u32 %s290, 1
        %s415 = scalar_lea.sflag [#allocation3], %s414
        %s416 = sand.u32 %s290, 1
        %s417 = smul.addr %s416, 8
        %s418 = scalar_lea.vmem [#allocation2], %s417
        %p419 = scmp.lt.s32.totalorder %s29, 1
        %s420 = scalar_select %p419, %s29, 1
        %p421 = scmp.lt.s32.totalorder %s30, 1
        %s422 = scalar_select %p421, %s30, 1
        %s423 = smul.addr %s422, 6
        %s424 = smul.addr %s420, 12
        %s425 = sadd.s32 %s423, %s424
        %s426 = smul.addr %s425, 4
        %s427 = scalar_lea.vmem %s0, %s426
        %p428 = scmp.lt.s32.totalorder %s30, 1
        %s429 = scalar_select %p428, %s30, 1
        %s430 = smul.addr %s429, 6
        %s431 = smul.addr %s430, 8
        %s432 = scalar_lea.vmem %s1, %s431
        %v434 = vld [vmem:[%s427] sm:$0xf]
        %v435 = vld [vmem:[%s427 + $0x4] sm:$0xf]
        %v436 = vld [vmem:[%s427 + $0x8] sm:$0xf]
        %v437 = vld [vmem:[%s427 + $0xc] sm:$0xf]
        %v438 = vld [vmem:[%s427 + $0x10] sm:$0xf]
        %v439 = vld [vmem:[%s427 + $0x14] sm:$0xf]
        %v440 = vld [vmem:[%s3] sm:$0xf]
        %v441 = vld [vmem:[%s3 + $0x4] sm:$0xf]
        %v442 = vld [vmem:[%s3 + $0x8] sm:$0xf]
        %v443 = vld [vmem:[%s3 + $0xc] sm:$0xf]
        %v444 = vld [vmem:[%s3 + $0x10] sm:$0x3]
        %v445 = vld [vmem:[%s4] sm:$0x1]
        %v447 = vlaneseq
        %v448 = vshrl.u32 %v447, 7
        %v449 = vsub.s32 0, %v448
        %v450 = vrot.slane %v445, %v449
        %v458 = vunpack.c.l.b16 %v434
        %v459 = vunpack.c.l.b16 %v435
        %v460 = vunpack.c.l.b16 %v436
        %v461 = vunpack.c.l.b16 %v437
        %v462 = vunpack.c.l.b16 %v438
        %v463 = vunpack.c.l.b16 %v439
        %v464 = vpack.c.b16 %v459, %v458
        %v465 = vpack.c.b16 %v461, %v460
        %v466 = vpack.c.b16 %v463, %v462
        %v472 = vunpack.c.l.b16 %v440
        %v473 = vunpack.c.l.b16 %v441
        %v474 = vunpack.c.l.b16 %v442
        %v475 = vunpack.c.l.b16 %v443
        %v476 = vunpack.c.l.b16 %v444
        %v477 = vpack.c.b16 %v473, %v472
        %v478 = vpack.c.b16 %v475, %v474
        %v479 = vpack.c.b16 %v476, %v476
        %vm482 = vcmask 293888
        %v484 = vsel %vm482, %v464, 0
        %v487 = vsel %vm482, %v465, 0
        %v490 = vsel %vm482, %v466, 0
        %vm492 = vcmask 1041408
        %v494 = vsel %vm492, %v479, 0
        %496 = vmatprep.subr.bf16.mxu0 0
        %497 = vmatpush1.bf16.msra.mxu0 0
        %498 = vmatprep.subr.bf16.mxu0 0
        %499 = vmatpush1.bf16.msra.mxu0 0
        %500 = vmatprep.subr.bf16.mxu0 0
        %501 = vmatpush1.bf16.msra.mxu0 0
        %502 = vmatprep.subr.bf16.mxu0 0
        %503 = vmatpush1.bf16.msra.mxu0 0
        %504 = vmatprep.subr.bf16.mxu0 0
        %505 = vmatpush1.bf16.msra.mxu0 0
        %506 = vmatprep.subr.bf16.mxu0 0
        %507 = vmatpush1.bf16.msra.mxu0 %v494
        %508 = vmatprep.subr.bf16.mxu0 0
        %509 = vmatpush1.bf16.msra.mxu0 %v478
        %510 = vmatprep.subr.bf16.mxu0 0
        %511 = vmatpush1.bf16.msra.mxu0 %v477
        %512 = vmatprep.subr.bf16.mxu0 0
        %513 = vmatpush2.bf16.msra.mxu0 0
        %514 = vmatprep.subr.bf16.mxu0 0
        %515 = vmatpush2.bf16.msra.mxu0 0
        %516 = vmatprep.subr.bf16.mxu0 0
        %517 = vmatpush2.bf16.msra.mxu0 0
        %518 = vmatprep.subr.bf16.mxu0 0
        %519 = vmatpush2.bf16.msra.mxu0 0
        %520 = vmatprep.subr.bf16.mxu0 0
        %521 = vmatpush2.bf16.msra.mxu0 0
        %522 = vmatprep.subr.bf16.mxu0 0
        %523 = vmatpush2.bf16.msra.mxu0 0
        %524 = vmatprep.subr.bf16.mxu0 0
        %525 = vmatpush2.bf16.msra.mxu0 0
        %526 = vmatprep.subr.bf16.mxu0 0
        %527 = vmatpush2.bf16.msra.mxu0 0
        %528 = vmatprep.mubr.bf16.mxu0 0
        %529 = vmatmul.mubr.bf16.gmra.mxu0 %v484
        %v530 = vpop.f32.mrf.mxu0
        %v531 = vadd.f32 %v450, %v530
        %v532 = vpop.f32.mrf.mxu0
        %v533 = vpop.f32.mrf.mxu0
        %v534 = vadd.f32 %v450, %v533
        %v535 = vpop.f32.mrf.mxu0
        %536 = vmatprep.mubr.bf16.mxu0 0
        %537 = vmatmul.mubr.bf16.gmra.mxu0 %v487
        %v538 = vpop.f32.mrf.mxu0
        %v539 = vadd.f32 %v450, %v538
        %v540 = vpop.f32.mrf.mxu0
        %v541 = vpop.f32.mrf.mxu0
        %v542 = vadd.f32 %v450, %v541
        %v543 = vpop.f32.mrf.mxu0
        %544 = vmatprep.mubr.bf16.mxu0 0
        %545 = vmatmul.mubr.bf16.gmra.mxu0 %v490
        %v546 = vpop.f32.mrf.mxu0
        %v547 = vadd.f32 %v450, %v546
        %v548 = vpop.f32.mrf.mxu0
        %v549 = vpop.f32.mrf.mxu0
        %v550 = vadd.f32 %v450, %v549
        %v551 = vpop.f32.mrf.mxu0
        %552 = vdwg.mxu0
        %v553 = vmax.f32 %v531, 0.0
        %v554 = vmax.f32 %v534, 0.0
        %v555 = vmax.f32 %v539, 0.0
        %v556 = vmax.f32 %v542, 0.0
        %v557 = vmax.f32 %v547, 0.0
        %v558 = vmax.f32 %v550, 0.0
        %v559 = vpack.c.bf16 %v554, %v553
        %v560 = vpack.c.bf16 %v556, %v555
        %v561 = vpack.c.bf16 %v558, %v557
        %v562 = vld [vmem:[%s5] sm:$0xf]
        %v563 = vld [vmem:[%s6] sm:$0x1]
        %v565 = vlaneseq
        %v566 = vshrl.u32 %v565, 7
        %v567 = vsub.s32 0, %v566
        %v568 = vrot.slane %v563, %v567
        %vm570 = vcmask 64512
        %v572 = vsel %vm570, %v559, 0
        %v575 = vsel %vm570, %v560, 0
        %v578 = vsel %vm570, %v561, 0
        %vm580 = vcmask 1043456
        %v582 = vsel %vm580, %v562, 0
        %584 = vmatprep.subr.bf16.mxu0 0
        %585 = vmatpush1.bf16.msra.mxu0 0
        %586 = vmatprep.subr.bf16.mxu0 0
        %587 = vmatpush1.bf16.msra.mxu0 0
        %588 = vmatprep.subr.bf16.mxu0 0
        %589 = vmatpush1.bf16.msra.mxu0 0
        %590 = vmatprep.subr.bf16.mxu0 0
        %591 = vmatpush1.bf16.msra.mxu0 0
        %592 = vmatprep.subr.bf16.mxu0 0
        %593 = vmatpush1.bf16.msra.mxu0 0
        %594 = vmatprep.subr.bf16.mxu0 0
        %595 = vmatpush1.bf16.msra.mxu0 0
        %596 = vmatprep.subr.bf16.mxu0 0
        %597 = vmatpush1.bf16.msra.mxu0 0
        %598 = vmatprep.subr.bf16.mxu0 0
        %599 = vmatpush1.bf16.msra.mxu0 %v582
        %600 = vmatprep.subr.bf16.mxu0 0
        %601 = vmatpush2.bf16.msra.mxu0 0
        %602 = vmatprep.subr.bf16.mxu0 0
        %603 = vmatpush2.bf16.msra.mxu0 0
        %604 = vmatprep.subr.bf16.mxu0 0
        %605 = vmatpush2.bf16.msra.mxu0 0
        %606 = vmatprep.subr.bf16.mxu0 0
        %607 = vmatpush2.bf16.msra.mxu0 0
        %608 = vmatprep.subr.bf16.mxu0 0
        %609 = vmatpush2.bf16.msra.mxu0 0
        %610 = vmatprep.subr.bf16.mxu0 0
        %611 = vmatpush2.bf16.msra.mxu0 0
        %612 = vmatprep.subr.bf16.mxu0 0
        %613 = vmatpush2.bf16.msra.mxu0 0
        %614 = vmatprep.subr.bf16.mxu0 0
        %615 = vmatpush2.bf16.msra.mxu0 0
        %616 = vmatprep.mubr.bf16.mxu0 0
        %617 = vmatmul.mubr.bf16.gmra.mxu0 %v572
        %v618 = vpop.f32.mrf.mxu0
        %v619 = vadd.f32 %v568, %v618
        %v620 = vpop.f32.mrf.mxu0
        %v621 = vpop.f32.mrf.mxu0
        %v622 = vadd.f32 %v568, %v621
        %v623 = vpop.f32.mrf.mxu0
        %624 = vmatprep.mubr.bf16.mxu0 0
        %625 = vmatmul.mubr.bf16.gmra.mxu0 %v575
        %v626 = vpop.f32.mrf.mxu0
        %v627 = vadd.f32 %v568, %v626
        %v628 = vpop.f32.mrf.mxu0
        %v629 = vpop.f32.mrf.mxu0
        %v630 = vadd.f32 %v568, %v629
        %v631 = vpop.f32.mrf.mxu0
        %632 = vmatprep.mubr.bf16.mxu0 0
        %633 = vmatmul.mubr.bf16.gmra.mxu0 %v578
        %v634 = vpop.f32.mrf.mxu0
        %v635 = vadd.f32 %v568, %v634
        %v636 = vpop.f32.mrf.mxu0
        %v637 = vpop.f32.mrf.mxu0
        %v638 = vadd.f32 %v568, %v637
        %v639 = vpop.f32.mrf.mxu0
        %640 = vdwg.mxu0
        %v641 = vmax.f32 %v619, 0.0
        %v642 = vmax.f32 %v622, 0.0
        %v643 = vmax.f32 %v627, 0.0
        %v644 = vmax.f32 %v630, 0.0
        %v645 = vmax.f32 %v635, 0.0
        %v646 = vmax.f32 %v638, 0.0
        %v647 = vld [vmem:[%s432] sm:$0xff]
        %v648 = vld [vmem:[%s432 + $0x8] sm:$0xff]
        %v649 = vld [vmem:[%s432 + $0x10] sm:$0xff]
        %v650 = vld [vmem:[%s432 + $0x18] sm:$0xff]
        %v651 = vld [vmem:[%s432 + $0x20] sm:$0xff]
        %v652 = vld [vmem:[%s432 + $0x28] sm:$0xff]
        %654 = vset.pattern.permute.xlu0 0
        %655 = vperm.xlu0 %654, %v647
        %v656 = vpop.permute.xlu0 %655
        %659 = vset.pattern.permute.xlu0 0
        %660 = vperm.xlu0 %659, %v648
        %v661 = vpop.permute.xlu0 %660
        %664 = vset.pattern.permute.xlu0 0
        %665 = vperm.xlu0 %664, %v649
        %v666 = vpop.permute.xlu0 %665
        %669 = vset.pattern.permute.xlu0 0
        %670 = vperm.xlu0 %669, %v650
        %v671 = vpop.permute.xlu0 %670
        %674 = vset.pattern.permute.xlu0 0
        %675 = vperm.xlu0 %674, %v651
        %v676 = vpop.permute.xlu0 %675
        %679 = vset.pattern.permute.xlu0 0
        %680 = vperm.xlu0 %679, %v652
        %v681 = vpop.permute.xlu0 %680
        %v683 = vmul.f32 %v641, %v656
        %v684 = vmul.f32 %v642, %v661
        %v685 = vmul.f32 %v643, %v666
        %v686 = vmul.f32 %v644, %v671
        %v687 = vmul.f32 %v645, %v676
        %v688 = vmul.f32 %v646, %v681
        %v689 = vld [vmem:[%s7] sm:$0xff]
        %v690 = vld [vmem:[%s7 + $0x8] sm:$0x1]
        %v691 = vld [vmem:[%s2] sm:$0xff]
        %v692 = vld [vmem:[%s8] sm:$0x1]
        %v694 = vlaneseq
        %v695 = vshrl.u32 %v694, 7
        %v696 = vsub.s32 0, %v695
        %v697 = vrot.slane %v692, %v696
        %700 = vset.pattern.permute.xlu0 0
        %701 = vperm.xlu0 %700, %v691
        %v702 = vpop.permute.xlu0 %701
        %v703 = vrot.slane %v702, 5
        %v705 = vmul.f32 %v687, %v703
        %v706 = vmul.f32 %v688, %v703
        %v707 = vlaneseq
        %v708 = vshrl.u32 %v707, 7
        %v709 = vsub.s32 0, %v708
        %v710 = vrot.slane %v689, %v709
        %v711 = vmul.f32 %v705, %v710
        %v712 = vmul.f32 %v706, %v710
        %v713 = vadd.f32 %v697, %v711
        %v714 = vadd.f32 %v697, %v712
        %v715 = vlaneseq
        %v716 = vshrl.u32 %v715, 7
        %v717 = vsub.s32 1, %v716
        %v718 = vrot.slane %v689, %v717
        %v719 = vmul.f32 %v686, %v718
        %v721 = vrot.slane %v719, 5
        %v723 = vadd.f32 %v713, %v721
        %v724 = vadd.f32 %v714, %v721
        %v725 = vlaneseq
        %v726 = vshrl.u32 %v725, 7
        %v727 = vsub.s32 2, %v726
        %v728 = vrot.slane %v689, %v727
        %v729 = vmul.f32 %v687, %v728
        %v730 = vmul.f32 %v688, %v728
        %vm733 = vcmask 1046528
        %v734 = vrot.slane %v729, 1
        %v735 = vrot.slane %v730, 1
        %v736 = vsel %vm733, %v734, %v735
        %v739 = vadd.f32 %v723, %v736
        %v740 = vadd.f32 %v724, %v735
        %v741 = vrot.slane %v702, 1
        %v743 = vmul.f32 %v684, %v741
        %v744 = vmul.f32 %v685, %v741
        %v745 = vlaneseq
        %v746 = vshrl.u32 %v745, 7
        %v747 = vsub.s32 3, %v746
        %v748 = vrot.slane %v689, %v747
        %v749 = vmul.f32 %v743, %v748
        %v750 = vmul.f32 %v744, %v748
        %v753 = vrot.slane %v749, 4
        %v754 = vrot.slane %v750, 4
        %v755 = vsel %vm580, %v753, %v754
        %v758 = vadd.f32 %v739, %v755
        %v759 = vadd.f32 %v740, %v754
        %v760 = vlaneseq
        %v761 = vshrl.u32 %v760, 7
        %v762 = vsub.s32 4, %v761
        %v763 = vrot.slane %v689, %v762
        %v764 = vmul.f32 %v683, %v763
        %v765 = vmul.f32 %v684, %v763
        %v768 = vrot.slane %v764, 1
        %v769 = vrot.slane %v765, 1
        %v770 = vsel %vm733, %v768, %v769
        %v773 = vadd.f32 %v758, %v770
        %v774 = vadd.f32 %v759, %v769
        %v775 = vlaneseq
        %v776 = vshrl.u32 %v775, 7
        %v777 = vsub.s32 5, %v776
        %v778 = vrot.slane %v689, %v777
        %v779 = vmul.f32 %v685, %v778
        %v781 = vrot.slane %v779, 5
        %v783 = vadd.f32 %v773, %v781
        %v784 = vadd.f32 %v774, %v781
        %v785 = vmul.f32 %v687, %v741
        %v786 = vmul.f32 %v688, %v741
        %v787 = vlaneseq
        %v788 = vshrl.u32 %v787, 7
        %v789 = vsub.s32 6, %v788
        %v790 = vrot.slane %v689, %v789
        %v791 = vmul.f32 %v785, %v790
        %v792 = vmul.f32 %v786, %v790
        %v795 = vrot.slane %v791, 4
        %v796 = vrot.slane %v792, 4
        %v797 = vsel %vm580, %v795, %v796
        %v800 = vadd.f32 %v783, %v797
        %v801 = vadd.f32 %v784, %v796
        %v802 = vlaneseq
        %v803 = vshrl.u32 %v802, 7
        %v804 = vsub.s32 7, %v803
        %v805 = vrot.slane %v689, %v804
        %v806 = vmul.f32 %v686, %v805
        %v807 = vmul.f32 %v687, %v805
        %v810 = vrot.slane %v806, 1
        %v811 = vrot.slane %v807, 1
        %v812 = vsel %vm733, %v810, %v811
        %v815 = vadd.f32 %v800, %v812
        %v816 = vadd.f32 %v801, %v811
        %v817 = vlaneseq
        %v818 = vshrl.u32 %v817, 7
        %v819 = vsub.s32 0, %v818
        %v820 = vrot.slane %v690, %v819
        %v821 = vmul.f32 %v688, %v820
        %v823 = vrot.slane %v821, 5
        %v825 = vadd.f32 %v815, %v823
        %v826 = vadd.f32 %v816, %v823
        %v827 = vpack.c.bf16 %v826, %v825
        %v828 = vld [vmem:[%s9] sm:$0xf]
        %v829 = vld [vmem:[%s9 + $0x4] sm:$0x3]
        %v830 = vld [vmem:[%s10] sm:$0x1]
        %v832 = vlaneseq
        %v833 = vshrl.u32 %v832, 7
        %v834 = vsub.s32 0, %v833
        %v835 = vrot.slane %v830, %v834
        %v838 = vshrl.u32 %v827, 16
        %v840 = vrot.slane %v838, 1
        %v841 = vshll.u32 %v827, 16
        %v843 = vrot.slane %v841, 2
        %v844 = vor.u32 %v840, %v843
        %v847 = vunpack.c.l.b16 %v828
        %v848 = vunpack.c.l.b16 %v829
        %v849 = vpack.c.b16 %v848, %v847
        %vm850 = vcmask 97280
        %v852 = vsel %vm850, %v844, 0
        %vm854 = vcmask 1045504
        %v856 = vsel %vm854, %v849, 0
        %858 = vmatprep.subr.bf16.mxu0 0
        %859 = vmatpush1.bf16.msra.mxu0 0
        %860 = vmatprep.subr.bf16.mxu0 0
        %861 = vmatpush1.bf16.msra.mxu0 0
        %862 = vmatprep.subr.bf16.mxu0 0
        %863 = vmatpush1.bf16.msra.mxu0 0
        %864 = vmatprep.subr.bf16.mxu0 0
        %865 = vmatpush1.bf16.msra.mxu0 0
        %866 = vmatprep.subr.bf16.mxu0 0
        %867 = vmatpush1.bf16.msra.mxu0 0
        %868 = vmatprep.subr.bf16.mxu0 0
        %869 = vmatpush1.bf16.msra.mxu0 0
        %870 = vmatprep.subr.bf16.mxu0 0
        %871 = vmatpush1.bf16.msra.mxu0 0
        %872 = vmatprep.subr.bf16.mxu0 0
        %873 = vmatpush1.bf16.msra.mxu0 %v856
        %874 = vmatprep.subr.bf16.mxu0 0
        %875 = vmatpush2.bf16.msra.mxu0 0
        %876 = vmatprep.subr.bf16.mxu0 0
        %877 = vmatpush2.bf16.msra.mxu0 0
        %878 = vmatprep.subr.bf16.mxu0 0
        %879 = vmatpush2.bf16.msra.mxu0 0
        %880 = vmatprep.subr.bf16.mxu0 0
        %881 = vmatpush2.bf16.msra.mxu0 0
        %882 = vmatprep.subr.bf16.mxu0 0
        %883 = vmatpush2.bf16.msra.mxu0 0
        %884 = vmatprep.subr.bf16.mxu0 0
        %885 = vmatpush2.bf16.msra.mxu0 0
        %886 = vmatprep.subr.bf16.mxu0 0
        %887 = vmatpush2.bf16.msra.mxu0 0
        %888 = vmatprep.subr.bf16.mxu0 0
        %889 = vmatpush2.bf16.msra.mxu0 0
        %890 = vmatprep.mubr.bf16.mxu0 0
        %891 = vmatmul.mubr.bf16.gmra.mxu0 %v852
        %v892 = vpop.f32.mrf.mxu0
        %v893 = vadd.f32 %v835, %v892
        %v894 = vpop.f32.mrf.mxu0
        %v895 = vpop.f32.mrf.mxu0
        %v896 = vpop.f32.mrf.mxu0
        %897 = vdwg.mxu0
        %v898 = vmax.f32 %v893, 0.0
        %899 = vst.msk [vmem:[%s418] sm:$0xff] %vm570, %v898
        %s900 = sand.u32 %s290, 1
        %s901 = scalar_lea.sflag [#allocation3], %s900
        %s902 = sand.u32 %s290, 1
        %s903 = smul.addr %s902, 8
        %s904 = scalar_lea.vmem [#allocation2], %s903
        // Predicated region
        $region65: #{stem_forward.1} parent=63 // pred_check
          %p905 = pneg %p300
        $region66: #{stem_forward.1} parent=63 // pred_check_branch
          %907 = sbr.rel (%p905) target = $region68
        $region67: #{stem_forward.1} parent=63 // pred_region
          %s909 = ssub.s32 128, 128
          %910 = vsyncadd %s901, %s909
          %s911 = smul.addr %s29, 2
          %s912 = sadd.s32 %s30, %s911
          %s913 = smul.addr %s912, 128
          %s914 = scalar_lea.hbm %s11, %s913
          %s916 = sshll.u32 %s904, 4
          %s917 = int_to_ptr.vmem [resolvable:$true] %s916
          %919 = dma.vmem_to_hbm [thread:$0]  %s917, 128, %s914, %s901
        $region68: #{stem_forward.1} parent=63 // pred_fallthru
          _
      $region64: #{stem_forward.1} parent=5 // pred_fallthru
        _
      %p920 = scmp.le.s32.totalorder 2, %s20
      // Predicated region
      $region69: #{stem_forward.1} parent=5 // pred_check
        %p921 = pneg %p920
      $region70: #{stem_forward.1} parent=5 // pred_check_branch
        %923 = sbr.rel (%p921) target = $region72
      $region71: #{stem_forward.1} parent=5 // pred_region
        %s924 = ssub.s32 %s20, 2
        // Predicated region
        $region73: #{stem_forward.1} parent=71 // pred_check
          %p925 = pneg %p306
        $region74: #{stem_forward.1} parent=71 // pred_check_branch
          %927 = sbr.rel (%p925) target = $region76
        $region75: #{stem_forward.1} parent=71 // pred_region
          %s928 = sand.u32 %s291, 1
          %s929 = scalar_lea.sflag [#allocation3], %s928
          %s930 = sand.u32 %s291, 1
          %s931 = smul.addr %s930, 8
          %s932 = scalar_lea.vmem [#allocation2], %s931
          %933 = dma.done %s929, 128
        $region76: #{stem_forward.1} parent=71 // pred_fallthru
          _
      $region72: #{stem_forward.1} parent=5 // pred_fallthru
        _
    $region6: #{stem_forward.1} parent=1 // loop_footer
      %s24 = sadd.s32 1, %s20
    $region7: #{stem_forward.1} parent=1 // loop_footer_branch
      %19 = sbr.rel target = $region3
    $region8: #{stem_forward.1} parent=1 // loop_exit
      _
    %934 = vsyncpa [#allocation3], 1
    %s935 = scalar_lea.sflag [#allocation3], 1
    %936 = vsyncpa %s935, 1

</llo_original>
